<compile_context>
chip_gen: v6e
topology: v6e:2x2x1
jax: 0.10.0
libtpu: 0.0.40
codegen_flags: <defaults>
</compile_context>

<pallas_src>
import functools

import jax
import jax.numpy as jnp
from jax.experimental import pallas as pl
from jax.experimental.pallas import tpu as pltpu


def _gvp_kernel(s_ref, v_ref, wh_ref, wss_ref, wsn_ref, bs_ref,
                wv_ref, wg_ref, bg_ref, s_out_ref, v_out_ref, *, h):
    """One tile of rows. All matmuls are single MXU calls on coord-folded weights."""
    eps = 1e-8

    # vh = wh(v^T): one matmul against the coord-folded weight.
    #   v_ref    : (tile_n, vi*3)  interleaved [k*3 + c]
    #   wh_ref   : (vi*3, 3*h)     -> output planar [c*h + j]
    vh = jnp.dot(v_ref[...], wh_ref[...], preferred_element_type=jnp.float32)
    vh0 = vh[:, 0 * h:1 * h]
    vh1 = vh[:, 1 * h:2 * h]
    vh2 = vh[:, 2 * h:3 * h]

    # vn = ||vh||_2 over the 3 spatial coords (clamp-then-sqrt, as in _norm_no_nan)
    vn = jnp.sqrt(jnp.maximum(vh0 * vh0 + vh1 * vh1 + vh2 * vh2, eps))

    # s = ws(cat([s, vn], -1))  ==  s @ Ws_s + vn @ Ws_vn + bs   (no lane concat)
    s_lin = (jnp.dot(s_ref[...], wss_ref[...], preferred_element_type=jnp.float32)
             + jnp.dot(vn, wsn_ref[...], preferred_element_type=jnp.float32)
             + bs_ref[...])

    # vector gate: gate = wsv(sigmoid(s)); weight/bias pre-triplicated along lanes
    # so the gate is already in interleaved (tile_n, vo*3) order.
    gate = (jnp.dot(jax.nn.sigmoid(s_lin), wg_ref[...],
                    preferred_element_type=jnp.float32) + bg_ref[...])

    # v = wv(vh): one matmul, output interleaved (tile_n, vo*3) == native (N, vo, 3) flat
    v_lin = jnp.dot(vh, wv_ref[...], preferred_element_type=jnp.float32)
    v_out_ref[...] = (v_lin * jax.nn.sigmoid(gate)).astype(v_out_ref.dtype)

    # scalar activation: silu
    s_out_ref[...] = jax.nn.silu(s_lin).astype(s_out_ref.dtype)


def _choose_tile_n(N):
    """Multiple of 8 that divides N, capped at 1024 so larger N gets a pipelined grid."""
    for t in (1024, 512, 256, 128, 64, 32, 16, 8):
        if N % t == 0:
            return t
    return N  # small / odd N: single full-extent tile (still satisfies (8,128) rule)


def gvp_forward(s, v, params, *, tile_n=None):
    """s: (N, si) f32;  v: (N, vi, 3) f32.  Returns (s_out (N, so), v_out (N, vo, 3))."""
    N, si = s.shape
    _, vi, _ = v.shape
    whT = params["whT"]      # (vi, h)
    wsT = params["wsT"]      # (si + h, so)   rows: [s ; vn]
    bs = params["bs"]        # (1, so)
    wvT = params["wvT"]      # (h, vo)
    wsvT = params["wsvT"]    # (so, vo)
    bsv = params["bsv"]      # (1, vo)
    h = whT.shape[1]
    so = wsT.shape[1]
    vo = wvT.shape[1]

    tile_n = tile_n or _choose_tile_n(N)
    assert N % tile_n == 0, "tile_n must divide N"
    assert tile_n % 8 == 0 or tile_n == N, "tile_n must be a multiple of 8 (or == N)"
    grid = (N // tile_n,)

    dt = s.dtype
    eye3 = jnp.eye(3, dtype=dt)
    # wh folded over the coordinate axis:
    #   rows interleaved [k*3 + c], cols planar [c*h + j]
    w_h = jnp.einsum('kj,cd->kcdj', whT, eye3).reshape(3 * vi, 3 * h)
    # ws split so the kernel avoids the lane concat
    w_s_s = wsT[:si]          # (si, so)
    w_s_vn = wsT[si:]         # (h, so)
    # wv folded: rows planar [c*h + j], cols interleaved [o*3 + c]
    w_v = jnp.einsum('jo,cd->cjod', wvT, eye3).reshape(3 * h, 3 * vo)
    # gate weight/bias triplicated along lanes to match the interleaved v output
    w_g = jnp.repeat(wsvT, 3, axis=1)     # (so, 3*vo)
    b_g = jnp.repeat(bsv, 3, axis=1)      # (1, 3*vo)

    # Free reshape of the native (N, vi, 3) layout -> no HBM transpose traffic.
    v_flat = v.reshape(N, vi * 3)

    flops = 2 * N * (9 * vi * h + si * so + h * so + 3 * so * vo + 9 * h * vo)
    transcendentals = N * (2 * so + 3 * vo + h)
    bytes_accessed = 4 * (N * (si + 3 * vi + so + 3 * vo)
                          + 9 * vi * h + si * so + h * so + so
                          + 9 * h * vo + 3 * so * vo + 3 * vo)

    s_out, v_out_flat = pl.pallas_call(
        functools.partial(_gvp_kernel, h=h),
        out_shape=(
            jax.ShapeDtypeStruct((N, so), s.dtype),
            jax.ShapeDtypeStruct((N, 3 * vo), v.dtype),
        ),
        grid_spec=pltpu.PrefetchScalarGridSpec(
            num_scalar_prefetch=0,
            grid=grid,
            in_specs=[
                pl.BlockSpec((tile_n, si), lambda i: (i, 0)),
                pl.BlockSpec((tile_n, 3 * vi), lambda i: (i, 0)),
                pl.BlockSpec((3 * vi, 3 * h), lambda i: (0, 0)),
                pl.BlockSpec((si, so), lambda i: (0, 0)),
                pl.BlockSpec((h, so), lambda i: (0, 0)),
                pl.BlockSpec((1, so), lambda i: (0, 0)),
                pl.BlockSpec((3 * h, 3 * vo), lambda i: (0, 0)),
                pl.BlockSpec((so, 3 * vo), lambda i: (0, 0)),
                pl.BlockSpec((1, 3 * vo), lambda i: (0, 0)),
            ],
            out_specs=[
                pl.BlockSpec((tile_n, so), lambda i: (i, 0)),
                pl.BlockSpec((tile_n, 3 * vo), lambda i: (i, 0)),
            ],
        ),
        compiler_params=pltpu.CompilerParams(
            dimension_semantics=("parallel",)),
        cost_estimate=pl.CostEstimate(
            flops=flops,
            transcendentals=transcendentals,
            bytes_accessed=bytes_accessed),
    )(s, v_flat, w_h, w_s_s, w_s_vn, bs, w_v, w_g, b_g)

    # Interleaved (N, vo*3) is exactly the native (N, vo, 3) layout -> free reshape.
    v_out = v_out_flat.reshape(N, vo, 3)
    return s_out, v_out


def gvp_reference(s, v, params):
    """Pure-JAX reference matching the PyTorch forward exactly."""
    eps = 1e-8
    vt = jnp.swapaxes(v, -1, -2)                       # (N, 3, vi)
    vh = vt @ params["whT"]                            # (N, 3, h)
    vn = jnp.sqrt(jnp.maximum(jnp.sum(vh * vh, axis=-2), eps))  # (N, h)
    s_lin = jnp.concatenate([s, vn], -1) @ params["wsT"] + params["bs"][0]
    v_out = jnp.swapaxes(vh @ params["wvT"], -1, -2)   # (N, vo, 3)
    gate = jax.nn.sigmoid(s_lin) @ params["wsvT"] + params["bsv"][0]
    v_out = v_out * jax.nn.sigmoid(gate)[..., None]
    return jax.nn.silu(s_lin), v_out


def init_params(key, si, vi, so, vo, h):
    ks = jax.random.split(key, 6)
    scale = 0.1
    return {
        "whT": scale * jax.random.normal(ks[0], (vi, h), jnp.float32),
        "wsT": scale * jax.random.normal(ks[1], (si + h, so), jnp.float32),
        "bs": scale * jax.random.normal(ks[2], (1, so), jnp.float32),
        "wvT": scale * jax.random.normal(ks[3], (h, vo), jnp.float32),
        "wsvT": scale * jax.random.normal(ks[4], (so, vo), jnp.float32),
        "bsv": scale * jax.random.normal(ks[5], (1, vo), jnp.float32),
    }


if __name__ == "__main__":
    # GVP(in_dims=(32, 16), out_dims=(32, 16)) -> h_dim = max(vi, vo) = 16
    N, si, vi, so, vo = 8, 32, 16, 32, 16
    h = max(vi, vo)

    key = jax.random.PRNGKey(0)
    k_s, k_v, k_p = jax.random.split(key, 3)
    s_in = jax.random.normal(k_s, (N, si), jnp.float32)
    v_in = jax.random.normal(k_v, (N, vi, 3), jnp.float32)
    params = init_params(k_p, si, vi, so, vo, h)

    s_out, v_out = gvp_forward(s_in, v_in, params)
    s_out = jax.block_until_ready(s_out)
    v_out = jax.block_until_ready(v_out)

    s_ref, v_ref = gvp_reference(s_in, v_in, params)
    assert s_out.shape == (N, so) and v_out.shape == (N, vo, 3)
    assert jnp.allclose(s_out, s_ref, atol=2e-3, rtol=2e-3)
    assert jnp.allclose(v_out, v_ref, atol=2e-3, rtol=2e-3)

    print("KERNEL_OK")
</pallas_src>

<mosaic_0001>
module attributes {stable_mosaic.version = 11 : i64} {
  func.func @_gvp_kernel(%arg0: i32, %arg1: memref<8x32xf32, #tpu.memory_space<vmem>>, %arg2: memref<8x48xf32, #tpu.memory_space<vmem>>, %arg3: memref<48x48xf32, #tpu.memory_space<vmem>>, %arg4: memref<32x32xf32, #tpu.memory_space<vmem>>, %arg5: memref<16x32xf32, #tpu.memory_space<vmem>>, %arg6: memref<1x32xf32, #tpu.memory_space<vmem>>, %arg7: memref<48x48xf32, #tpu.memory_space<vmem>>, %arg8: memref<32x48xf32, #tpu.memory_space<vmem>>, %arg9: memref<1x48xf32, #tpu.memory_space<vmem>>, %arg10: memref<8x32xf32, #tpu.memory_space<vmem>>, %arg11: memref<8x48xf32, #tpu.memory_space<vmem>>) attributes {dimension_semantics = [#tpu.dimension_semantics<parallel>], iteration_bounds = array<i64: 1>, scalar_prefetch = 0 : i64, scratch_operands = 0 : i64, tpu.core_type = #tpu.core_type<tc>, window_params = [{transform_indices = @transform_0, window_bounds = array<i64: 8, 32>}, {transform_indices = @transform_1, window_bounds = array<i64: 8, 48>}, {pipeline_mode = #tpu.pipeline_mode<synchronous>, transform_indices = @transform_2, window_bounds = array<i64: 48, 48>}, {pipeline_mode = #tpu.pipeline_mode<synchronous>, transform_indices = @transform_3, window_bounds = array<i64: 32, 32>}, {pipeline_mode = #tpu.pipeline_mode<synchronous>, transform_indices = @transform_4, window_bounds = array<i64: 16, 32>}, {pipeline_mode = #tpu.pipeline_mode<synchronous>, transform_indices = @transform_5, window_bounds = array<i64: 1, 32>}, {pipeline_mode = #tpu.pipeline_mode<synchronous>, transform_indices = @transform_6, window_bounds = array<i64: 48, 48>}, {pipeline_mode = #tpu.pipeline_mode<synchronous>, transform_indices = @transform_7, window_bounds = array<i64: 32, 48>}, {pipeline_mode = #tpu.pipeline_mode<synchronous>, transform_indices = @transform_8, window_bounds = array<i64: 1, 48>}, {transform_indices = @transform_9, window_bounds = array<i64: 8, 32>}, {transform_indices = @transform_10, window_bounds = array<i64: 8, 48>}]} {
    %c0 = arith.constant 0 : index
    %c0_0 = arith.constant 0 : index
    %0 = vector.load %arg2[%c0, %c0_0] : memref<8x48xf32, #tpu.memory_space<vmem>>, vector<8x48xf32>
    %c0_1 = arith.constant 0 : index
    %c0_2 = arith.constant 0 : index
    %1 = vector.load %arg3[%c0_1, %c0_2] : memref<48x48xf32, #tpu.memory_space<vmem>>, vector<48x48xf32>
    %cst = arith.constant dense<0.000000e+00> : vector<8x48xf32>
    %2 = tpu.matmul %0, %1, %cst {dimension_numbers = #tpu.dot_dimension_numbers<[1], [0], [0], [1], [0, 0, 1, 1], [], []>} : vector<8x48xf32>, vector<48x48xf32>, vector<8x48xf32> -> vector<8x48xf32>
    %3 = vector.extract_strided_slice %2 {offsets = [0, 0], sizes = [8, 16], strides = [1, 1]} : vector<8x48xf32> to vector<8x16xf32>
    %4 = vector.extract_strided_slice %2 {offsets = [0, 16], sizes = [8, 16], strides = [1, 1]} : vector<8x48xf32> to vector<8x16xf32>
    %5 = vector.extract_strided_slice %2 {offsets = [0, 32], sizes = [8, 16], strides = [1, 1]} : vector<8x48xf32> to vector<8x16xf32>
    %6 = arith.mulf %3, %3 : vector<8x16xf32>
    %7 = arith.mulf %4, %4 : vector<8x16xf32>
    %8 = arith.addf %6, %7 : vector<8x16xf32>
    %9 = arith.mulf %5, %5 : vector<8x16xf32>
    %10 = arith.addf %8, %9 : vector<8x16xf32>
    %cst_3 = arith.constant 9.99999993E-9 : f32
    %11 = vector.broadcast %cst_3 : f32 to vector<8x16xf32>
    %12 = arith.maximumf %10, %11 : vector<8x16xf32>
    %13 = math.sqrt %12 : vector<8x16xf32>
    %c0_4 = arith.constant 0 : index
    %c0_5 = arith.constant 0 : index
    %14 = vector.load %arg1[%c0_4, %c0_5] : memref<8x32xf32, #tpu.memory_space<vmem>>, vector<8x32xf32>
    %c0_6 = arith.constant 0 : index
    %c0_7 = arith.constant 0 : index
    %15 = vector.load %arg4[%c0_6, %c0_7] : memref<32x32xf32, #tpu.memory_space<vmem>>, vector<32x32xf32>
    %cst_8 = arith.constant dense<0.000000e+00> : vector<8x32xf32>
    %16 = tpu.matmul %14, %15, %cst_8 {dimension_numbers = #tpu.dot_dimension_numbers<[1], [0], [0], [1], [0, 0, 1, 1], [], []>} : vector<8x32xf32>, vector<32x32xf32>, vector<8x32xf32> -> vector<8x32xf32>
    %c0_9 = arith.constant 0 : index
    %c0_10 = arith.constant 0 : index
    %17 = vector.load %arg5[%c0_9, %c0_10] : memref<16x32xf32, #tpu.memory_space<vmem>>, vector<16x32xf32>
    %cst_11 = arith.constant dense<0.000000e+00> : vector<8x32xf32>
    %18 = tpu.matmul %13, %17, %cst_11 {dimension_numbers = #tpu.dot_dimension_numbers<[1], [0], [0], [1], [0, 0, 1, 1], [], []>} : vector<8x16xf32>, vector<16x32xf32>, vector<8x32xf32> -> vector<8x32xf32>
    %19 = arith.addf %16, %18 : vector<8x32xf32>
    %c0_12 = arith.constant 0 : index
    %c0_13 = arith.constant 0 : index
    %20 = vector.load %arg6[%c0_12, %c0_13] : memref<1x32xf32, #tpu.memory_space<vmem>>, vector<1x32xf32>
    %21 = vector.broadcast %20 : vector<1x32xf32> to vector<8x32xf32>
    %22 = arith.addf %19, %21 : vector<8x32xf32>
    %23 = arith.negf %22 : vector<8x32xf32>
    %24 = math.exp %23 : vector<8x32xf32>
    %cst_14 = arith.constant 1.000000e+00 : f32
    %25 = vector.broadcast %cst_14 : f32 to vector<8x32xf32>
    %26 = arith.addf %25, %24 : vector<8x32xf32>
    %27 = arith.divf %25, %26 : vector<8x32xf32>
    %c0_15 = arith.constant 0 : index
    %c0_16 = arith.constant 0 : index
    %28 = vector.load %arg8[%c0_15, %c0_16] : memref<32x48xf32, #tpu.memory_space<vmem>>, vector<32x48xf32>
    %cst_17 = arith.constant dense<0.000000e+00> : vector<8x48xf32>
    %29 = tpu.matmul %27, %28, %cst_17 {dimension_numbers = #tpu.dot_dimension_numbers<[1], [0], [0], [1], [0, 0, 1, 1], [], []>} : vector<8x32xf32>, vector<32x48xf32>, vector<8x48xf32> -> vector<8x48xf32>
    %c0_18 = arith.constant 0 : index
    %c0_19 = arith.constant 0 : index
    %30 = vector.load %arg9[%c0_18, %c0_19] : memref<1x48xf32, #tpu.memory_space<vmem>>, vector<1x48xf32>
    %31 = vector.broadcast %30 : vector<1x48xf32> to vector<8x48xf32>
    %32 = arith.addf %29, %31 : vector<8x48xf32>
    %c0_20 = arith.constant 0 : index
    %c0_21 = arith.constant 0 : index
    %33 = vector.load %arg7[%c0_20, %c0_21] : memref<48x48xf32, #tpu.memory_space<vmem>>, vector<48x48xf32>
    %cst_22 = arith.constant dense<0.000000e+00> : vector<8x48xf32>
    %34 = tpu.matmul %2, %33, %cst_22 {dimension_numbers = #tpu.dot_dimension_numbers<[1], [0], [0], [1], [0, 0, 1, 1], [], []>} : vector<8x48xf32>, vector<48x48xf32>, vector<8x48xf32> -> vector<8x48xf32>
    %35 = arith.negf %32 : vector<8x48xf32>
    %36 = math.exp %35 : vector<8x48xf32>
    %cst_23 = arith.constant 1.000000e+00 : f32
    %37 = vector.broadcast %cst_23 : f32 to vector<8x48xf32>
    %38 = arith.addf %37, %36 : vector<8x48xf32>
    %39 = arith.divf %37, %38 : vector<8x48xf32>
    %40 = arith.mulf %34, %39 : vector<8x48xf32>
    %c0_24 = arith.constant 0 : index
    %c0_25 = arith.constant 0 : index
    %41 = vector.load %arg11[%c0_24, %c0_25] : memref<8x48xf32, #tpu.memory_space<vmem>>, vector<8x48xf32>
    tpu.vector_store %arg11[%c0_24, %c0_25], %40 {strides = array<i32>} : memref<8x48xf32, #tpu.memory_space<vmem>>, vector<8x48xf32>,
    %42 = arith.negf %22 : vector<8x32xf32>
    %43 = math.exp %42 : vector<8x32xf32>
    %cst_26 = arith.constant 1.000000e+00 : f32
    %44 = vector.broadcast %cst_26 : f32 to vector<8x32xf32>
    %45 = arith.addf %44, %43 : vector<8x32xf32>
    %46 = arith.divf %44, %45 : vector<8x32xf32>
    %47 = arith.mulf %22, %46 : vector<8x32xf32>
    %c0_27 = arith.constant 0 : index
    %c0_28 = arith.constant 0 : index
    %48 = vector.load %arg10[%c0_27, %c0_28] : memref<8x32xf32, #tpu.memory_space<vmem>>, vector<8x32xf32>
    tpu.vector_store %arg10[%c0_27, %c0_28], %47 {strides = array<i32>} : memref<8x32xf32, #tpu.memory_space<vmem>>, vector<8x32xf32>,
    return
  }
  func.func @transform_0(%arg0: i32) -> (i32, i32) {
    %c0_i32 = arith.constant 0 : i32
    %c0_i32_0 = arith.constant 0 : i32
    return %arg0, %c0_i32 : i32, i32
  }
  func.func @transform_1(%arg0: i32) -> (i32, i32) {
    %c0_i32 = arith.constant 0 : i32
    %c0_i32_0 = arith.constant 0 : i32
    return %arg0, %c0_i32 : i32, i32
  }
  func.func @transform_2(%arg0: i32) -> (i32, i32) {
    %c0_i32 = arith.constant 0 : i32
    %c0_i32_0 = arith.constant 0 : i32
    %c0_i32_1 = arith.constant 0 : i32
    return %c0_i32, %c0_i32_0 : i32, i32
  }
  func.func @transform_3(%arg0: i32) -> (i32, i32) {
    %c0_i32 = arith.constant 0 : i32
    %c0_i32_0 = arith.constant 0 : i32
    %c0_i32_1 = arith.constant 0 : i32
    return %c0_i32, %c0_i32_0 : i32, i32
  }
  func.func @transform_4(%arg0: i32) -> (i32, i32) {
    %c0_i32 = arith.constant 0 : i32
    %c0_i32_0 = arith.constant 0 : i32
    %c0_i32_1 = arith.constant 0 : i32
    return %c0_i32, %c0_i32_0 : i32, i32
  }
  func.func @transform_5(%arg0: i32) -> (i32, i32) {
    %c0_i32 = arith.constant 0 : i32
    %c0_i32_0 = arith.constant 0 : i32
    %c0_i32_1 = arith.constant 0 : i32
    return %c0_i32, %c0_i32_0 : i32, i32
  }
  func.func @transform_6(%arg0: i32) -> (i32, i32) {
    %c0_i32 = arith.constant 0 : i32
    %c0_i32_0 = arith.constant 0 : i32
    %c0_i32_1 = arith.constant 0 : i32
    return %c0_i32, %c0_i32_0 : i32, i32
  }
  func.func @transform_7(%arg0: i32) -> (i32, i32) {
    %c0_i32 = arith.constant 0 : i32
    %c0_i32_0 = arith.constant 0 : i32
    %c0_i32_1 = arith.constant 0 : i32
    return %c0_i32, %c0_i32_0 : i32, i32
  }
  func.func @transform_8(%arg0: i32) -> (i32, i32) {
    %c0_i32 = arith.constant 0 : i32
    %c0_i32_0 = arith.constant 0 : i32
    %c0_i32_1 = arith.constant 0 : i32
    return %c0_i32, %c0_i32_0 : i32, i32
  }
  func.func @transform_9(%arg0: i32) -> (i32, i32) {
    %c0_i32 = arith.constant 0 : i32
    %c0_i32_0 = arith.constant 0 : i32
    return %arg0, %c0_i32 : i32, i32
  }
  func.func @transform_10(%arg0: i32) -> (i32, i32) {
    %c0_i32 = arith.constant 0 : i32
    %c0_i32_0 = arith.constant 0 : i32
    return %arg0, %c0_i32 : i32, i32
  }
}

</mosaic_0001>

<llo_original>
// kernel: tpu_custom_call.1
$region0: #{tpu_custom_call.1}
  #allocation0 [shape = 'u32[]', space=smem, size = 0x4, offset = 0x4, fixed_abs, tag = 'smem constant byte address 0x4 - core index']
  #allocation1 [shape = 'u32[144,128]{1,0:T(1,128)}', space=vmem, size = 0x12000, scoped, tag = 'internal scratch']
  %s0 = inlined_call_operand.hbm [shape: f32[8,32], index: 0, kind: input, shape index: {}]
  %s1 = inlined_call_operand.hbm [shape: f32[8,48], index: 1, kind: input, shape index: {}]
  %s2 = inlined_call_operand.hbm [shape: f32[48,48], index: 2, kind: input, shape index: {}]
  %s3 = inlined_call_operand.hbm [shape: f32[32,32], index: 3, kind: input, shape index: {}]
  %s4 = inlined_call_operand.hbm [shape: f32[16,32], index: 4, kind: input, shape index: {}]
  %s5 = inlined_call_operand.vmem [shape: f32[1,32], index: 5, kind: input, shape index: {}]
  %s6 = inlined_call_operand.hbm [shape: f32[48,48], index: 6, kind: input, shape index: {}]
  %s7 = inlined_call_operand.hbm [shape: f32[32,48], index: 7, kind: input, shape index: {}]
  %s8 = inlined_call_operand.vmem [shape: f32[1,48], index: 8, kind: input, shape index: {}]
  %s9 = inlined_call_operand.hbm [shape: f32[8,32], index: 9, kind: output, shape index: {0}]
  %s10 = inlined_call_operand.hbm [shape: f32[8,48], index: 10, kind: output, shape index: {1}]
  %11 = xla_tuple %s9, %s10
  %s12 = sld [smem:[#allocation0]]
  $region82: #{tpu_custom_call.1} parent=0
    _
  %s14 = ssub.s32 1, %s12
  %s15 = scalar_select 0, %s14, %s12
  $region1: #{tpu_custom_call.1} parent=0
    #allocation2 [shape = 'u8[4096]{0}', space=vmem, size = 0x1000, scoped, tag = 'input window, operand 0, single buffered']
    #allocation3 [shape = 's32[1]{0}', space=sflag, size = 0x4, scoped, tag = 'scoped memory for tpu_custom_call.1']
    #allocation4 [shape = 's32[1]{0}', space=sflag, size = 0x4, scoped, tag = 'scoped memory for tpu_custom_call.1']
    #allocation5 [shape = 'u8[4096]{0}', space=vmem, size = 0x1000, scoped, tag = 'input window, operand 1, single buffered']
    #allocation6 [shape = 's32[1]{0}', space=sflag, size = 0x4, scoped, tag = 'scoped memory for tpu_custom_call.1']
    #allocation7 [shape = 'u8[24576]{0}', space=vmem, size = 0x6000, scoped, tag = 'input window, operand 2, single buffered']
    #allocation8 [shape = 'u8[16384]{0}', space=vmem, size = 0x4000, scoped, tag = 'input window, operand 3, single buffered']
    #allocation9 [shape = 's32[1]{0}', space=sflag, size = 0x4, scoped, tag = 'scoped memory for tpu_custom_call.1']
    #allocation10 [shape = 'u8[8192]{0}', space=vmem, size = 0x2000, scoped, tag = 'input window, operand 4, single buffered']
    #allocation11 [shape = 'u8[24576]{0}', space=vmem, size = 0x6000, scoped, tag = 'input window, operand 6, single buffered']
    #allocation12 [shape = 's32[1]{0}', space=sflag, size = 0x4, scoped, tag = 'scoped memory for tpu_custom_call.1']
    #allocation13 [shape = 'u8[16384]{0}', space=vmem, size = 0x4000, scoped, tag = 'input window, operand 7, single buffered']
    #allocation14 [shape = 'u8[4096]{0}', space=vmem, size = 0x1000, scoped, tag = 'output window, operand 0, single buffered']
    #allocation15 [shape = 'u8[4096]{0}', space=vmem, size = 0x1000, scoped, tag = 'output window, operand 1, single buffered']
    #allocation16 [shape = 's32[1]{0}', space=sflag, size = 0x4, scoped, tag = 'scoped memory for tpu_custom_call.1']
    %16 = vsyncpa [#allocation3], 0
    %17 = vsyncpa [#allocation6], 0
    %18 = vsyncpa [#allocation9], 0
    %19 = vsyncpa [#allocation12], 0
    %20 = vsyncpa [#allocation4], 0
    %21 = vsyncpa [#allocation16], 0
    // Predicated region
    $region2: #{tpu_custom_call.1} parent=1 // pred_check
      _
    $region3: #{tpu_custom_call.1} parent=1 // pred_check_branch
      %23 = sbr.rel (0) target = $region5
    $region4: #{tpu_custom_call.1} parent=1 // pred_region
      %s25 = ssub.s32 128, 128
      %26 = vsyncadd [#allocation3], %s25
      %s28 = sshll.u32 [#allocation2], 4
      %s29 = int_to_ptr.vmem [resolvable:$true] %s28
      %31 = dma.hbm_to_vmem [thread:$0]  %s0, 128, %s29, [#allocation3]
    $region5: #{tpu_custom_call.1} parent=1 // pred_fallthru
      _
    // Predicated region
    $region6: #{tpu_custom_call.1} parent=1 // pred_check
      _
    $region7: #{tpu_custom_call.1} parent=1 // pred_check_branch
      %33 = sbr.rel (0) target = $region9
    $region8: #{tpu_custom_call.1} parent=1 // pred_region
      %s35 = ssub.s32 128, 128
      %36 = vsyncadd [#allocation6], %s35
      %s38 = sshll.u32 [#allocation5], 4
      %s39 = int_to_ptr.vmem [resolvable:$true] %s38
      %41 = dma.hbm_to_vmem [thread:$0]  %s1, 128, %s39, [#allocation6]
    $region9: #{tpu_custom_call.1} parent=1 // pred_fallthru
      _
    // Predicated region
    $region10: #{tpu_custom_call.1} parent=1 // pred_check
      _
    $region11: #{tpu_custom_call.1} parent=1 // pred_check_branch
      %43 = sbr.rel (0) target = $region13
    $region12: #{tpu_custom_call.1} parent=1 // pred_region
      %s45 = ssub.s32 768, 768
      %46 = vsyncadd [#allocation6], %s45
      %s47 = sshll.u32 [#allocation7], 4
      %s48 = int_to_ptr.vmem [resolvable:$true] %s47
      %53 = dma.hbm_to_vmem [thread:$0]  %s2, 768, %s48, [#allocation6], 128, 128, 8
    $region13: #{tpu_custom_call.1} parent=1 // pred_fallthru
      _
    // Predicated region
    $region14: #{tpu_custom_call.1} parent=1 // pred_check
      _
    $region15: #{tpu_custom_call.1} parent=1 // pred_check_branch
      %55 = sbr.rel (0) target = $region17
    $region16: #{tpu_custom_call.1} parent=1 // pred_region
      %s57 = ssub.s32 512, 512
      %58 = vsyncadd [#allocation9], %s57
      %s59 = sshll.u32 [#allocation8], 4
      %s60 = int_to_ptr.vmem [resolvable:$true] %s59
      %65 = dma.hbm_to_vmem [thread:$0]  %s3, 512, %s60, [#allocation9], 128, 128, 8
    $region17: #{tpu_custom_call.1} parent=1 // pred_fallthru
      _
    // Predicated region
    $region18: #{tpu_custom_call.1} parent=1 // pred_check
      _
    $region19: #{tpu_custom_call.1} parent=1 // pred_check_branch
      %67 = sbr.rel (0) target = $region21
    $region20: #{tpu_custom_call.1} parent=1 // pred_region
      %s69 = ssub.s32 256, 256
      %70 = vsyncadd [#allocation9], %s69
      %s71 = sshll.u32 [#allocation10], 4
      %s72 = int_to_ptr.vmem [resolvable:$true] %s71
      %77 = dma.hbm_to_vmem [thread:$0]  %s4, 256, %s72, [#allocation9], 128, 128, 8
    $region21: #{tpu_custom_call.1} parent=1 // pred_fallthru
      _
    // Predicated region
    $region22: #{tpu_custom_call.1} parent=1 // pred_check
      _
    $region23: #{tpu_custom_call.1} parent=1 // pred_check_branch
      %79 = sbr.rel (0) target = $region25
    $region24: #{tpu_custom_call.1} parent=1 // pred_region
      _
    $region25: #{tpu_custom_call.1} parent=1 // pred_fallthru
      _
    // Predicated region
    $region26: #{tpu_custom_call.1} parent=1 // pred_check
      _
    $region27: #{tpu_custom_call.1} parent=1 // pred_check_branch
      %81 = sbr.rel (0) target = $region29
    $region28: #{tpu_custom_call.1} parent=1 // pred_region
      %s83 = ssub.s32 768, 768
      %84 = vsyncadd [#allocation12], %s83
      %s85 = sshll.u32 [#allocation11], 4
      %s86 = int_to_ptr.vmem [resolvable:$true] %s85
      %91 = dma.hbm_to_vmem [thread:$0]  %s6, 768, %s86, [#allocation12], 128, 128, 8
    $region29: #{tpu_custom_call.1} parent=1 // pred_fallthru
      _
    // Predicated region
    $region30: #{tpu_custom_call.1} parent=1 // pred_check
      _
    $region31: #{tpu_custom_call.1} parent=1 // pred_check_branch
      %93 = sbr.rel (0) target = $region33
    $region32: #{tpu_custom_call.1} parent=1 // pred_region
      %s95 = ssub.s32 512, 512
      %96 = vsyncadd [#allocation12], %s95
      %s97 = sshll.u32 [#allocation13], 4
      %s98 = int_to_ptr.vmem [resolvable:$true] %s97
      %103 = dma.hbm_to_vmem [thread:$0]  %s7, 512, %s98, [#allocation12], 128, 128, 8
    $region33: #{tpu_custom_call.1} parent=1 // pred_fallthru
      _
    // Predicated region
    $region34: #{tpu_custom_call.1} parent=1 // pred_check
      _
    $region35: #{tpu_custom_call.1} parent=1 // pred_check_branch
      %105 = sbr.rel (0) target = $region37
    $region36: #{tpu_custom_call.1} parent=1 // pred_region
      _
    $region37: #{tpu_custom_call.1} parent=1 // pred_fallthru
      _
    // Predicated region
    $region38: #{tpu_custom_call.1} parent=1 // pred_check
      _
    $region39: #{tpu_custom_call.1} parent=1 // pred_check_branch
      %107 = sbr.rel (0) target = $region41
    $region40: #{tpu_custom_call.1} parent=1 // pred_region
      %108 = dma.done [#allocation3], 128
    $region41: #{tpu_custom_call.1} parent=1 // pred_fallthru
      _
    // Predicated region
    $region42: #{tpu_custom_call.1} parent=1 // pred_check
      _
    $region43: #{tpu_custom_call.1} parent=1 // pred_check_branch
      %110 = sbr.rel (0) target = $region45
    $region44: #{tpu_custom_call.1} parent=1 // pred_region
      %111 = dma.done [#allocation6], 128
    $region45: #{tpu_custom_call.1} parent=1 // pred_fallthru
      _
    // Predicated region
    $region46: #{tpu_custom_call.1} parent=1 // pred_check
      _
    $region47: #{tpu_custom_call.1} parent=1 // pred_check_branch
      %113 = sbr.rel (0) target = $region49
    $region48: #{tpu_custom_call.1} parent=1 // pred_region
      %114 = dma.done [#allocation6], 768
    $region49: #{tpu_custom_call.1} parent=1 // pred_fallthru
      _
    // Predicated region
    $region50: #{tpu_custom_call.1} parent=1 // pred_check
      _
    $region51: #{tpu_custom_call.1} parent=1 // pred_check_branch
      %116 = sbr.rel (0) target = $region53
    $region52: #{tpu_custom_call.1} parent=1 // pred_region
      %117 = dma.done [#allocation9], 512
    $region53: #{tpu_custom_call.1} parent=1 // pred_fallthru
      _
    // Predicated region
    $region54: #{tpu_custom_call.1} parent=1 // pred_check
      _
    $region55: #{tpu_custom_call.1} parent=1 // pred_check_branch
      %119 = sbr.rel (0) target = $region57
    $region56: #{tpu_custom_call.1} parent=1 // pred_region
      %120 = dma.done [#allocation9], 256
    $region57: #{tpu_custom_call.1} parent=1 // pred_fallthru
      _
    // Predicated region
    $region58: #{tpu_custom_call.1} parent=1 // pred_check
      _
    $region59: #{tpu_custom_call.1} parent=1 // pred_check_branch
      %122 = sbr.rel (0) target = $region61
    $region60: #{tpu_custom_call.1} parent=1 // pred_region
      %123 = dma.done [#allocation12], 768
    $region61: #{tpu_custom_call.1} parent=1 // pred_fallthru
      _
    // Predicated region
    $region62: #{tpu_custom_call.1} parent=1 // pred_check
      _
    $region63: #{tpu_custom_call.1} parent=1 // pred_check_branch
      %125 = sbr.rel (0) target = $region65
    $region64: #{tpu_custom_call.1} parent=1 // pred_region
      %126 = dma.done [#allocation12], 512
    $region65: #{tpu_custom_call.1} parent=1 // pred_fallthru
      _
    %v127 = vld [vmem:[#allocation5] sm:$0xff]
    %v128 = vld [vmem:[#allocation7] sm:$0xff]
    %v129 = vld [vmem:[#allocation7 + $0x8] sm:$0xff]
    %v130 = vld [vmem:[#allocation7 + $0x10] sm:$0xff]
    %v131 = vld [vmem:[#allocation7 + $0x18] sm:$0xff]
    %v132 = vld [vmem:[#allocation7 + $0x20] sm:$0xff]
    %v133 = vld [vmem:[#allocation7 + $0x28] sm:$0xff]
    %vm134 = vcmask 392192
    %v136 = vsel %vm134, %v127, 0
    %138 = vmatprep.subr.mxu0 0.0
    %139 = vmatpush1.msra.mxu0 0.0
    %140 = vmatprep.subr.mxu0 0.0
    %141 = vmatpush1.msra.mxu0 0.0
    %142 = vmatprep.subr.mxu0 0.0
    %143 = vmatpush1.msra.mxu0 0.0
    %144 = vmatprep.subr.mxu0 0.0
    %145 = vmatpush1.msra.mxu0 0.0
    %146 = vmatprep.subr.mxu0 0.0
    %147 = vmatpush1.msra.mxu0 0.0
    %148 = vmatprep.subr.mxu0 0.0
    %149 = vmatpush1.msra.mxu0 0.0
    %150 = vmatprep.subr.mxu0 0.0
    %151 = vmatpush1.msra.mxu0 0.0
    %152 = vmatprep.subr.mxu0 0.0
    %153 = vmatpush1.msra.mxu0 0.0
    %154 = vmatprep.subr.mxu0 0.0
    %155 = vmatpush1.msra.mxu0 0.0
    %156 = vmatprep.subr.mxu0 0.0
    %157 = vmatpush1.msra.mxu0 0.0
    %158 = vmatprep.subr.mxu0 0.0
    %159 = vmatpush1.msra.mxu0 %v133
    %160 = vmatprep.subr.mxu0 0.0
    %161 = vmatpush1.msra.mxu0 %v132
    %162 = vmatprep.subr.mxu0 0.0
    %163 = vmatpush1.msra.mxu0 %v131
    %164 = vmatprep.subr.mxu0 0.0
    %165 = vmatpush1.msra.mxu0 %v130
    %166 = vmatprep.subr.mxu0 0.0
    %167 = vmatpush1.msra.mxu0 %v129
    %168 = vmatprep.subr.mxu0 0.0
    %169 = vmatpush1.msra.mxu0 %v128
    %170 = vmatprep.subr.mxu0 0.0
    %171 = vmatpush2.msra.mxu0 0.0
    %172 = vmatprep.subr.mxu0 0.0
    %173 = vmatpush2.msra.mxu0 0.0
    %174 = vmatprep.subr.mxu0 0.0
    %175 = vmatpush2.msra.mxu0 0.0
    %176 = vmatprep.subr.mxu0 0.0
    %177 = vmatpush2.msra.mxu0 0.0
    %178 = vmatprep.subr.mxu0 0.0
    %179 = vmatpush2.msra.mxu0 0.0
    %180 = vmatprep.subr.mxu0 0.0
    %181 = vmatpush2.msra.mxu0 0.0
    %182 = vmatprep.subr.mxu0 0.0
    %183 = vmatpush2.msra.mxu0 0.0
    %184 = vmatprep.subr.mxu0 0.0
    %185 = vmatpush2.msra.mxu0 0.0
    %186 = vmatprep.subr.mxu0 0.0
    %187 = vmatpush2.msra.mxu0 0.0
    %188 = vmatprep.subr.mxu0 0.0
    %189 = vmatpush2.msra.mxu0 0.0
    %190 = vmatprep.subr.mxu0 0.0
    %191 = vmatpush2.msra.mxu0 0.0
    %192 = vmatprep.subr.mxu0 0.0
    %193 = vmatpush2.msra.mxu0 0.0
    %194 = vmatprep.subr.mxu0 0.0
    %195 = vmatpush2.msra.mxu0 0.0
    %196 = vmatprep.subr.mxu0 0.0
    %197 = vmatpush2.msra.mxu0 0.0
    %198 = vmatprep.subr.mxu0 0.0
    %199 = vmatpush2.msra.mxu0 0.0
    %200 = vmatprep.subr.mxu0 0.0
    %201 = vmatpush2.msra.mxu0 0.0
    %202 = vmatprep.mubr.f32.mxu0 0.0
    %203 = vmatmul.mubr.f32.gmra.mxu0 %v136
    %v204 = vpop.f32.mrf.mxu0
    %v205 = vadd.f32 0.0, %v204
    %v206 = vpop.f32.mrf.mxu0
    %207 = vdwg.mxu0
    %v208 = vmul.f32 %v205, %v205
    %210 = vrot.lane.b32.xlu0 %v208, 112
    %v211 = vpop.permute.xlu0 %210
    %v213 = vadd.f32 %v208, %v211
    %214 = vrot.lane.b32.xlu0 %v208, 96
    %v215 = vpop.permute.xlu0 %214
    %v217 = vadd.f32 %v213, %v215
    %v218 = vmax.f32 %v217, 1e-08
    %v219 = vrsqrt.pop %v218
    %v220 = vmul.f32 %v218, %v219
    %vm221 = vcmp.eq.f32.partialorder %v218, inf
    %v222 = vsel %vm221, %v218, %v220
    %vm223 = vcmp.eq.f32.partialorder %v218, 0.0
    %v224 = vand.u32 %v218, 2147483648
    %v225 = vsel %vm223, %v224, %v222
    %v226 = vld [vmem:[#allocation2] sm:$0xff]
    %v227 = vld [vmem:[#allocation8] sm:$0xff]
    %v228 = vld [vmem:[#allocation8 + $0x8] sm:$0xff]
    %v229 = vld [vmem:[#allocation8 + $0x10] sm:$0xff]
    %v230 = vld [vmem:[#allocation8 + $0x18] sm:$0xff]
    %v231 = vld [vmem:[#allocation10] sm:$0xff]
    %v232 = vld [vmem:[#allocation10 + $0x8] sm:$0xff]
    %vm233 = vcmask 130048
    %v235 = vsel %vm233, %v225, 0
    %237 = vmatprep.subr.mxu0 0.0
    %238 = vmatpush1.msra.mxu0 0.0
    %239 = vmatprep.subr.mxu0 0.0
    %240 = vmatpush1.msra.mxu0 0.0
    %241 = vmatprep.subr.mxu0 0.0
    %242 = vmatpush1.msra.mxu0 0.0
    %243 = vmatprep.subr.mxu0 0.0
    %244 = vmatpush1.msra.mxu0 0.0
    %245 = vmatprep.subr.mxu0 0.0
    %246 = vmatpush1.msra.mxu0 0.0
    %247 = vmatprep.subr.mxu0 0.0
    %248 = vmatpush1.msra.mxu0 0.0
    %249 = vmatprep.subr.mxu0 0.0
    %250 = vmatpush1.msra.mxu0 0.0
    %251 = vmatprep.subr.mxu0 0.0
    %252 = vmatpush1.msra.mxu0 0.0
    %253 = vmatprep.subr.mxu0 0.0
    %254 = vmatpush1.msra.mxu0 0.0
    %255 = vmatprep.subr.mxu0 0.0
    %256 = vmatpush1.msra.mxu0 0.0
    %257 = vmatprep.subr.mxu0 0.0
    %258 = vmatpush1.msra.mxu0 0.0
    %259 = vmatprep.subr.mxu0 0.0
    %260 = vmatpush1.msra.mxu0 0.0
    %261 = vmatprep.subr.mxu0 0.0
    %262 = vmatpush1.msra.mxu0 0.0
    %263 = vmatprep.subr.mxu0 0.0
    %264 = vmatpush1.msra.mxu0 0.0
    %265 = vmatprep.subr.mxu0 0.0
    %266 = vmatpush1.msra.mxu0 %v232
    %267 = vmatprep.subr.mxu0 0.0
    %268 = vmatpush1.msra.mxu0 %v231
    %269 = vmatprep.subr.mxu0 0.0
    %270 = vmatpush2.msra.mxu0 0.0
    %271 = vmatprep.subr.mxu0 0.0
    %272 = vmatpush2.msra.mxu0 0.0
    %273 = vmatprep.subr.mxu0 0.0
    %274 = vmatpush2.msra.mxu0 0.0
    %275 = vmatprep.subr.mxu0 0.0
    %276 = vmatpush2.msra.mxu0 0.0
    %277 = vmatprep.subr.mxu0 0.0
    %278 = vmatpush2.msra.mxu0 0.0
    %279 = vmatprep.subr.mxu0 0.0
    %280 = vmatpush2.msra.mxu0 0.0
    %281 = vmatprep.subr.mxu0 0.0
    %282 = vmatpush2.msra.mxu0 0.0
    %283 = vmatprep.subr.mxu0 0.0
    %284 = vmatpush2.msra.mxu0 0.0
    %285 = vmatprep.subr.mxu0 0.0
    %286 = vmatpush2.msra.mxu0 0.0
    %287 = vmatprep.subr.mxu0 0.0
    %288 = vmatpush2.msra.mxu0 0.0
    %289 = vmatprep.subr.mxu0 0.0
    %290 = vmatpush2.msra.mxu0 0.0
    %291 = vmatprep.subr.mxu0 0.0
    %292 = vmatpush2.msra.mxu0 0.0
    %293 = vmatprep.subr.mxu0 0.0
    %294 = vmatpush2.msra.mxu0 0.0
    %295 = vmatprep.subr.mxu0 0.0
    %296 = vmatpush2.msra.mxu0 0.0
    %297 = vmatprep.subr.mxu0 0.0
    %298 = vmatpush2.msra.mxu0 0.0
    %299 = vmatprep.subr.mxu0 0.0
    %300 = vmatpush2.msra.mxu0 0.0
    %301 = vmatprep.mubr.f32.mxu0 0.0
    %302 = vmatmul.mubr.f32.gmra.mxu0 %v235
    %v303 = vpop.f32.mrf.mxu0
    %v304 = vadd.f32 0.0, %v303
    %v305 = vpop.f32.mrf.mxu0
    %306 = vdwg.mxu0
    %vm307 = vcmask 261120
    %v309 = vsel %vm307, %v226, 0
    %311 = vmatprep.subr.mxu0 0.0
    %312 = vmatpush1.msra.mxu0 0.0
    %313 = vmatprep.subr.mxu0 0.0
    %314 = vmatpush1.msra.mxu0 0.0
    %315 = vmatprep.subr.mxu0 0.0
    %316 = vmatpush1.msra.mxu0 0.0
    %317 = vmatprep.subr.mxu0 0.0
    %318 = vmatpush1.msra.mxu0 0.0
    %319 = vmatprep.subr.mxu0 0.0
    %320 = vmatpush1.msra.mxu0 0.0
    %321 = vmatprep.subr.mxu0 0.0
    %322 = vmatpush1.msra.mxu0 0.0
    %323 = vmatprep.subr.mxu0 0.0
    %324 = vmatpush1.msra.mxu0 0.0
    %325 = vmatprep.subr.mxu0 0.0
    %326 = vmatpush1.msra.mxu0 0.0
    %327 = vmatprep.subr.mxu0 0.0
    %328 = vmatpush1.msra.mxu0 0.0
    %329 = vmatprep.subr.mxu0 0.0
    %330 = vmatpush1.msra.mxu0 0.0
    %331 = vmatprep.subr.mxu0 0.0
    %332 = vmatpush1.msra.mxu0 0.0
    %333 = vmatprep.subr.mxu0 0.0
    %334 = vmatpush1.msra.mxu0 0.0
    %335 = vmatprep.subr.mxu0 0.0
    %336 = vmatpush1.msra.mxu0 %v230
    %337 = vmatprep.subr.mxu0 0.0
    %338 = vmatpush1.msra.mxu0 %v229
    %339 = vmatprep.subr.mxu0 0.0
    %340 = vmatpush1.msra.mxu0 %v228
    %341 = vmatprep.subr.mxu0 0.0
    %342 = vmatpush1.msra.mxu0 %v227
    %343 = vmatprep.subr.mxu0 0.0
    %344 = vmatpush2.msra.mxu0 0.0
    %345 = vmatprep.subr.mxu0 0.0
    %346 = vmatpush2.msra.mxu0 0.0
    %347 = vmatprep.subr.mxu0 0.0
    %348 = vmatpush2.msra.mxu0 0.0
    %349 = vmatprep.subr.mxu0 0.0
    %350 = vmatpush2.msra.mxu0 0.0
    %351 = vmatprep.subr.mxu0 0.0
    %352 = vmatpush2.msra.mxu0 0.0
    %353 = vmatprep.subr.mxu0 0.0
    %354 = vmatpush2.msra.mxu0 0.0
    %355 = vmatprep.subr.mxu0 0.0
    %356 = vmatpush2.msra.mxu0 0.0
    %357 = vmatprep.subr.mxu0 0.0
    %358 = vmatpush2.msra.mxu0 0.0
    %359 = vmatprep.subr.mxu0 0.0
    %360 = vmatpush2.msra.mxu0 0.0
    %361 = vmatprep.subr.mxu0 0.0
    %362 = vmatpush2.msra.mxu0 0.0
    %363 = vmatprep.subr.mxu0 0.0
    %364 = vmatpush2.msra.mxu0 0.0
    %365 = vmatprep.subr.mxu0 0.0
    %366 = vmatpush2.msra.mxu0 0.0
    %367 = vmatprep.subr.mxu0 0.0
    %368 = vmatpush2.msra.mxu0 0.0
    %369 = vmatprep.subr.mxu0 0.0
    %370 = vmatpush2.msra.mxu0 0.0
    %371 = vmatprep.subr.mxu0 0.0
    %372 = vmatpush2.msra.mxu0 0.0
    %373 = vmatprep.subr.mxu0 0.0
    %374 = vmatpush2.msra.mxu0 0.0
    %375 = vmatprep.mubr.f32.mxu0 0.0
    %376 = vmatmul.mubr.f32.gmra.mxu0 %v309
    %v377 = vpop.f32.mrf.mxu0
    %v378 = vadd.f32 %v304, %v377
    %v379 = vpop.f32.mrf.mxu0
    %380 = vdwg.mxu0
    %v381 = vld [vmem:[%s5] sm:$0x1]
    %v383 = vlaneseq
    %v384 = vshrl.u32 %v383, 7
    %v385 = vsub.s32 0, %v384
    %v386 = vrot.slane %v381, %v385
    %v388 = vadd.f32 %v378, %v386
    %v389 = vxor.u32 %v388, 2147483648
    %v390 = vmul.f32 %v389, 1.442695
    %v391 = vpow.pop %v390
    %v392 = vadd.f32 %v391, 1.0
    %v393 = vrcp.pop %v392
    %v394 = vmul.f32 1.0, %v393
    %v395 = vld [vmem:[#allocation13] sm:$0xff]
    %v396 = vld [vmem:[#allocation13 + $0x8] sm:$0xff]
    %v397 = vld [vmem:[#allocation13 + $0x10] sm:$0xff]
    %v398 = vld [vmem:[#allocation13 + $0x18] sm:$0xff]
    %v399 = vld [vmem:[%s8] sm:$0x1]
    %v401 = vlaneseq
    %v402 = vshrl.u32 %v401, 7
    %v403 = vsub.s32 0, %v402
    %v404 = vrot.slane %v399, %v403
    %v407 = vsel %vm307, %v394, 0
    %409 = vmatprep.subr.mxu0 0.0
    %410 = vmatpush1.msra.mxu0 0.0
    %411 = vmatprep.subr.mxu0 0.0
    %412 = vmatpush1.msra.mxu0 0.0
    %413 = vmatprep.subr.mxu0 0.0
    %414 = vmatpush1.msra.mxu0 0.0
    %415 = vmatprep.subr.mxu0 0.0
    %416 = vmatpush1.msra.mxu0 0.0
    %417 = vmatprep.subr.mxu0 0.0
    %418 = vmatpush1.msra.mxu0 0.0
    %419 = vmatprep.subr.mxu0 0.0
    %420 = vmatpush1.msra.mxu0 0.0
    %421 = vmatprep.subr.mxu0 0.0
    %422 = vmatpush1.msra.mxu0 0.0
    %423 = vmatprep.subr.mxu0 0.0
    %424 = vmatpush1.msra.mxu0 0.0
    %425 = vmatprep.subr.mxu0 0.0
    %426 = vmatpush1.msra.mxu0 0.0
    %427 = vmatprep.subr.mxu0 0.0
    %428 = vmatpush1.msra.mxu0 0.0
    %429 = vmatprep.subr.mxu0 0.0
    %430 = vmatpush1.msra.mxu0 0.0
    %431 = vmatprep.subr.mxu0 0.0
    %432 = vmatpush1.msra.mxu0 0.0
    %433 = vmatprep.subr.mxu0 0.0
    %434 = vmatpush1.msra.mxu0 %v398
    %435 = vmatprep.subr.mxu0 0.0
    %436 = vmatpush1.msra.mxu0 %v397
    %437 = vmatprep.subr.mxu0 0.0
    %438 = vmatpush1.msra.mxu0 %v396
    %439 = vmatprep.subr.mxu0 0.0
    %440 = vmatpush1.msra.mxu0 %v395
    %441 = vmatprep.subr.mxu0 0.0
    %442 = vmatpush2.msra.mxu0 0.0
    %443 = vmatprep.subr.mxu0 0.0
    %444 = vmatpush2.msra.mxu0 0.0
    %445 = vmatprep.subr.mxu0 0.0
    %446 = vmatpush2.msra.mxu0 0.0
    %447 = vmatprep.subr.mxu0 0.0
    %448 = vmatpush2.msra.mxu0 0.0
    %449 = vmatprep.subr.mxu0 0.0
    %450 = vmatpush2.msra.mxu0 0.0
    %451 = vmatprep.subr.mxu0 0.0
    %452 = vmatpush2.msra.mxu0 0.0
    %453 = vmatprep.subr.mxu0 0.0
    %454 = vmatpush2.msra.mxu0 0.0
    %455 = vmatprep.subr.mxu0 0.0
    %456 = vmatpush2.msra.mxu0 0.0
    %457 = vmatprep.subr.mxu0 0.0
    %458 = vmatpush2.msra.mxu0 0.0
    %459 = vmatprep.subr.mxu0 0.0
    %460 = vmatpush2.msra.mxu0 0.0
    %461 = vmatprep.subr.mxu0 0.0
    %462 = vmatpush2.msra.mxu0 0.0
    %463 = vmatprep.subr.mxu0 0.0
    %464 = vmatpush2.msra.mxu0 0.0
    %465 = vmatprep.subr.mxu0 0.0
    %466 = vmatpush2.msra.mxu0 0.0
    %467 = vmatprep.subr.mxu0 0.0
    %468 = vmatpush2.msra.mxu0 0.0
    %469 = vmatprep.subr.mxu0 0.0
    %470 = vmatpush2.msra.mxu0 0.0
    %471 = vmatprep.subr.mxu0 0.0
    %472 = vmatpush2.msra.mxu0 0.0
    %473 = vmatprep.mubr.f32.mxu0 0.0
    %474 = vmatmul.mubr.f32.gmra.mxu0 %v407
    %v475 = vpop.f32.mrf.mxu0
    %v476 = vadd.f32 %v404, %v475
    %v477 = vpop.f32.mrf.mxu0
    %478 = vdwg.mxu0
    %v479 = vld [vmem:[#allocation11] sm:$0xff]
    %v480 = vld [vmem:[#allocation11 + $0x8] sm:$0xff]
    %v481 = vld [vmem:[#allocation11 + $0x10] sm:$0xff]
    %v482 = vld [vmem:[#allocation11 + $0x18] sm:$0xff]
    %v483 = vld [vmem:[#allocation11 + $0x20] sm:$0xff]
    %v484 = vld [vmem:[#allocation11 + $0x28] sm:$0xff]
    %v486 = vsel %vm134, %v205, 0
    %488 = vmatprep.subr.mxu0 0.0
    %489 = vmatpush1.msra.mxu0 0.0
    %490 = vmatprep.subr.mxu0 0.0
    %491 = vmatpush1.msra.mxu0 0.0
    %492 = vmatprep.subr.mxu0 0.0
    %493 = vmatpush1.msra.mxu0 0.0
    %494 = vmatprep.subr.mxu0 0.0
    %495 = vmatpush1.msra.mxu0 0.0
    %496 = vmatprep.subr.mxu0 0.0
    %497 = vmatpush1.msra.mxu0 0.0
    %498 = vmatprep.subr.mxu0 0.0
    %499 = vmatpush1.msra.mxu0 0.0
    %500 = vmatprep.subr.mxu0 0.0
    %501 = vmatpush1.msra.mxu0 0.0
    %502 = vmatprep.subr.mxu0 0.0
    %503 = vmatpush1.msra.mxu0 0.0
    %504 = vmatprep.subr.mxu0 0.0
    %505 = vmatpush1.msra.mxu0 0.0
    %506 = vmatprep.subr.mxu0 0.0
    %507 = vmatpush1.msra.mxu0 0.0
    %508 = vmatprep.subr.mxu0 0.0
    %509 = vmatpush1.msra.mxu0 %v484
    %510 = vmatprep.subr.mxu0 0.0
    %511 = vmatpush1.msra.mxu0 %v483
    %512 = vmatprep.subr.mxu0 0.0
    %513 = vmatpush1.msra.mxu0 %v482
    %514 = vmatprep.subr.mxu0 0.0
    %515 = vmatpush1.msra.mxu0 %v481
    %516 = vmatprep.subr.mxu0 0.0
    %517 = vmatpush1.msra.mxu0 %v480
    %518 = vmatprep.subr.mxu0 0.0
    %519 = vmatpush1.msra.mxu0 %v479
    %520 = vmatprep.subr.mxu0 0.0
    %521 = vmatpush2.msra.mxu0 0.0
    %522 = vmatprep.subr.mxu0 0.0
    %523 = vmatpush2.msra.mxu0 0.0
    %524 = vmatprep.subr.mxu0 0.0
    %525 = vmatpush2.msra.mxu0 0.0
    %526 = vmatprep.subr.mxu0 0.0
    %527 = vmatpush2.msra.mxu0 0.0
    %528 = vmatprep.subr.mxu0 0.0
    %529 = vmatpush2.msra.mxu0 0.0
    %530 = vmatprep.subr.mxu0 0.0
    %531 = vmatpush2.msra.mxu0 0.0
    %532 = vmatprep.subr.mxu0 0.0
    %533 = vmatpush2.msra.mxu0 0.0
    %534 = vmatprep.subr.mxu0 0.0
    %535 = vmatpush2.msra.mxu0 0.0
    %536 = vmatprep.subr.mxu0 0.0
    %537 = vmatpush2.msra.mxu0 0.0
    %538 = vmatprep.subr.mxu0 0.0
    %539 = vmatpush2.msra.mxu0 0.0
    %540 = vmatprep.subr.mxu0 0.0
    %541 = vmatpush2.msra.mxu0 0.0
    %542 = vmatprep.subr.mxu0 0.0
    %543 = vmatpush2.msra.mxu0 0.0
    %544 = vmatprep.subr.mxu0 0.0
    %545 = vmatpush2.msra.mxu0 0.0
    %546 = vmatprep.subr.mxu0 0.0
    %547 = vmatpush2.msra.mxu0 0.0
    %548 = vmatprep.subr.mxu0 0.0
    %549 = vmatpush2.msra.mxu0 0.0
    %550 = vmatprep.subr.mxu0 0.0
    %551 = vmatpush2.msra.mxu0 0.0
    %552 = vmatprep.mubr.f32.mxu0 0.0
    %553 = vmatmul.mubr.f32.gmra.mxu0 %v486
    %v554 = vpop.f32.mrf.mxu0
    %v555 = vadd.f32 0.0, %v554
    %v556 = vpop.f32.mrf.mxu0
    %557 = vdwg.mxu0
    %v558 = vxor.u32 %v476, 2147483648
    %v559 = vmul.f32 %v558, 1.442695
    %v560 = vpow.pop %v559
    %v561 = vadd.f32 %v560, 1.0
    %v562 = vrcp.pop %v561
    %v563 = vmul.f32 1.0, %v562
    %v564 = vmul.f32 %v555, %v563
    %565 = vst.msk [vmem:[#allocation15] sm:$0xff] %vm134, %v564
    %v566 = vmul.f32 %v388, %v394
    %567 = vst.msk [vmem:[#allocation14] sm:$0xff] %vm307, %v566
    // Predicated region
    $region66: #{tpu_custom_call.1} parent=1 // pred_check
      _
    $region67: #{tpu_custom_call.1} parent=1 // pred_check_branch
      %569 = sbr.rel (0) target = $region69
    $region68: #{tpu_custom_call.1} parent=1 // pred_region
      %s571 = ssub.s32 128, 128
      %572 = vsyncadd [#allocation4], %s571
      %s574 = sshll.u32 [#allocation14], 4
      %s575 = int_to_ptr.vmem [resolvable:$true] %s574
      %577 = dma.vmem_to_hbm [thread:$0]  %s575, 128, %s9, [#allocation4]
    $region69: #{tpu_custom_call.1} parent=1 // pred_fallthru
      _
    // Predicated region
    $region70: #{tpu_custom_call.1} parent=1 // pred_check
      _
    $region71: #{tpu_custom_call.1} parent=1 // pred_check_branch
      %579 = sbr.rel (0) target = $region73
    $region72: #{tpu_custom_call.1} parent=1 // pred_region
      %s581 = ssub.s32 128, 128
      %582 = vsyncadd [#allocation16], %s581
      %s584 = sshll.u32 [#allocation15], 4
      %s585 = int_to_ptr.vmem [resolvable:$true] %s584
      %587 = dma.vmem_to_hbm [thread:$0]  %s585, 128, %s10, [#allocation16]
    $region73: #{tpu_custom_call.1} parent=1 // pred_fallthru
      _
    // Predicated region
    $region74: #{tpu_custom_call.1} parent=1 // pred_check
      _
    $region75: #{tpu_custom_call.1} parent=1 // pred_check_branch
      %589 = sbr.rel (0) target = $region77
    $region76: #{tpu_custom_call.1} parent=1 // pred_region
      %590 = dma.done [#allocation4], 128
    $region77: #{tpu_custom_call.1} parent=1 // pred_fallthru
      _
    // Predicated region
    $region78: #{tpu_custom_call.1} parent=1 // pred_check
      _
    $region79: #{tpu_custom_call.1} parent=1 // pred_check_branch
      %592 = sbr.rel (0) target = $region81
    $region80: #{tpu_custom_call.1} parent=1 // pred_region
      %593 = dma.done [#allocation16], 128
    $region81: #{tpu_custom_call.1} parent=1 // pred_fallthru
      _
    %594 = vsyncpa [#allocation3], 1
    %595 = vsyncpa [#allocation6], 1
    %596 = vsyncpa [#allocation9], 1
    %597 = vsyncpa [#allocation12], 1
    %598 = vsyncpa [#allocation4], 1
    %599 = vsyncpa [#allocation16], 1

</llo_original>
